<compile_context>
chip_gen: v5e
topology: v5e:2x2
jax: 0.10.0
libtpu: 0.0.40
codegen_flags: <defaults>
</compile_context>

<pallas_src>
import functools

import jax
import jax.numpy as jnp
from jax import lax
from jax.experimental import pallas as pl
from jax.experimental.pallas import tpu as pltpu


def _round_up(x, m):
    return ((x + m - 1) // m) * m


# ----------------------------------------------------------------------------
# Fused Pallas kernel
# ----------------------------------------------------------------------------
def _fused_mlp_kernel(*refs, n_mediate, compute_dtype):
    idx_ref, feat_ref, w0f_ref, w0e_ref, b0_ref = refs[:5]
    pos = 5
    mediate = [(refs[pos + 2 * i], refs[pos + 2 * i + 1]) for i in range(n_mediate)]
    pos += 2 * n_mediate
    wl_ref, bl_ref, o_ref = refs[pos], refs[pos + 1], refs[pos + 2]

    f32 = jnp.float32
    cd = compute_dtype

    def mxu(a, w_ref):
        # MXU matmul with f32 accumulation; operands in compute_dtype.
        return jnp.dot(a.astype(cd), w_ref[...], preferred_element_type=f32)

    # ---- all four embedding lookups as ONE K=128 multi-hot MXU push --------
    # idx already carries the slot offsets [0, n_t, n_t+n_s, 2*n_t+n_s]; the 4
    # slots are disjoint rows of w0e (tables pre-folded through W0 * 7.0).
    idx = idx_ref[...]                                        # (TB, 4) int32
    tb = idx.shape[0]
    k_emb = w0e_ref.shape[0]                                  # 128
    iota = lax.broadcasted_iota(jnp.int32, (tb, k_emb), 1)
    hot = ((idx[:, 0:1] == iota) | (idx[:, 1:2] == iota)
           | (idx[:, 2:3] == iota) | (idx[:, 3:4] == iota))
    oh = hot.astype(cd)                                       # (TB, 128) multi-hot

    # ---- first block: feature matmul + folded-embedding matmul + bias + ReLU
    h = mxu(feat_ref[...], w0f_ref) + mxu(oh, w0e_ref) + b0_ref[...]
    h = jnp.maximum(h, 0.0)

    # ---- mediate blocks: Linear + ReLU (f32 elementwise) --------------------
    for w_ref, b_ref in mediate:
        h = jnp.maximum(mxu(h, w_ref) + b_ref[...], 0.0)

    # ---- last layer: Linear, lane-dense (output padded to 128 multiple) ----
    o_ref[...] = (mxu(h, wl_ref) + bl_ref[...]).astype(o_ref.dtype)


# ----------------------------------------------------------------------------
# Parameter construction (mimics nn.Linear / nn.Embedding init)
# ----------------------------------------------------------------------------
def _init_linear(key, in_dim, out_dim):
    kw, kb = jax.random.split(key)
    bound = 1.0 / (in_dim ** 0.5)
    # stored transposed: (in_dim, out_dim), so y = x @ W + b
    w = jax.random.uniform(kw, (in_dim, out_dim), jnp.float32, -bound, bound)
    b = jax.random.uniform(kb, (out_dim,), jnp.float32, -bound, bound)
    return w, b


def init_params(key, feature_channel, output_channel, hidden_list,
                embedding_dim=32):
    """Logical (PyTorch-equivalent) parameters."""
    keys = jax.random.split(key, 4)
    params = {}
    # nn.Embedding default init: N(0, 1)
    params["tissue_emb"] = jax.random.normal(keys[0], (32, embedding_dim), jnp.float32)
    params["sex_emb"] = jax.random.normal(keys[1], (4, embedding_dim), jnp.float32)
    fc_in = feature_channel + embedding_dim * 4
    dims = [fc_in] + list(hidden_list)
    layer_keys = jax.random.split(keys[2], len(dims) - 1)
    params["blocks"] = [_init_linear(layer_keys[i], dims[i], dims[i + 1])
                        for i in range(len(dims) - 1)]
    params["last"] = _init_linear(keys[3], hidden_list[-1], output_channel)
    return params


def prepare_fused_params(params, feature_channel, embedding_dim=32,
                         compute_dtype=jnp.float32):
    """One-time folding for the fused kernel:
         * *7.0 folded into the embedding tables, then the tables are folded
           through the first-layer weight chunks and stacked into a single
           (128, h0) effective weight with disjoint slots,
         * hidden dims AND the output dim zero-padded to multiples of 128,
         * biases reshaped to (1, D) f32, weights stored in compute_dtype."""
    blocks = params["blocks"]
    hidden = [w.shape[1] for (w, _) in blocks]
    hidden_p = [_round_up(h, 128) for h in hidden]

    w0, b0 = blocks[0]
    h0, h0p = hidden[0], hidden_p[0]
    w0p = jnp.pad(w0, ((0, 0), (0, h0p - h0)))
    fc, ed = feature_channel, embedding_dim

    t7 = params["tissue_emb"] * 7.0                        # (32, ed)
    s7 = params["sex_emb"] * 7.0                           # (4, ed)
    n_t, n_s = t7.shape[0], s7.shape[0]

    # Fold tables through the first-layer chunks and stack (disjoint slots).
    w_t1 = t7 @ w0p[fc:fc + ed]
    w_s1 = s7 @ w0p[fc + ed:fc + 2 * ed]
    w_t2 = t7 @ w0p[fc + 2 * ed:fc + 3 * ed]
    w_s2 = s7 @ w0p[fc + 3 * ed:fc + 4 * ed]
    k_used = 2 * (n_t + n_s)                               # 72
    k_emb = _round_up(max(k_used, 1), 128)                 # 128
    w0_emb = jnp.concatenate(
        [w_t1, w_s1, w_t2, w_s2,
         jnp.zeros((k_emb - k_used, h0p), jnp.float32)], axis=0)

    fp = {
        "emb_offsets": jnp.array([0, n_t, n_t + n_s, 2 * n_t + n_s], jnp.int32),
        "w0_feat": w0p[:fc].astype(compute_dtype),
        "w0_emb": w0_emb.astype(compute_dtype),
        "b0": jnp.pad(b0, (0, h0p - h0)).reshape(1, h0p).astype(jnp.float32),
    }

    mediate = []
    for li in range(1, len(blocks)):
        w, b = blocks[li]
        hin, hout = hidden[li - 1], hidden[li]
        hinp, houtp = hidden_p[li - 1], hidden_p[li]
        wp = jnp.pad(w, ((0, hinp - hin), (0, houtp - hout))).astype(compute_dtype)
        bp = jnp.pad(b, (0, houtp - hout)).reshape(1, houtp).astype(jnp.float32)
        mediate.append((wp, bp))
    fp["mediate"] = mediate

    wl, bl = params["last"]
    dout = wl.shape[1]
    dout_p = _round_up(dout, 128)                          # lane-dense output store
    fp["w_last"] = jnp.pad(
        wl, ((0, hidden_p[-1] - hidden[-1]), (0, dout_p - dout))).astype(compute_dtype)
    fp["b_last"] = jnp.pad(bl, (0, dout_p - dout)).reshape(1, dout_p).astype(jnp.float32)
    fp["out_dim"] = dout
    return fp


# ----------------------------------------------------------------------------
# Forward pass (semantics of FCNet_2Embedding.forward, if_embedding=True,
# if_bn=False, if_dp=False) — one fused pallas_call.
# ----------------------------------------------------------------------------
def fcnet_2embedding_forward(fused_params, feature, additional1, additional2,
                             *, max_batch_tile=512):
    fp = fused_params
    b, fc = feature.shape
    dout = fp["out_dim"]
    dout_p = fp["b_last"].shape[1]
    compute_dtype = fp["w_last"].dtype
    n_mediate = len(fp["mediate"])

    # Pack the 4 index vectors into one (B, 4) int32 array with the slot
    # offsets already added (so the kernel needs a single iota/compare set).
    idx = (jnp.stack([additional1["tissue_index"], additional1["sex_index"],
                      additional2["tissue_index"], additional2["sex_index"]],
                     axis=1).astype(jnp.int32)
           + fp["emb_offsets"][None, :])
    feature = feature.astype(jnp.float32)

    # Batch tile: multiple of 8 sublanes, >= 2 grid steps when the batch
    # allows it (v7x 2-TC sharding over the "parallel" axis), large tile to
    # amortize per-grid-step overhead.  Ragged last tile handled by Pallas'
    # masked output writeback -> no host-side jnp.pad copy of the inputs.
    half = -(-b // 2)
    tb = max(8, min(max_batch_tile, _round_up(half, 8)))
    grid = (pl.cdiv(b, tb),)

    kernel = functools.partial(_fused_mlp_kernel, n_mediate=n_mediate,
                               compute_dtype=compute_dtype)

    def batch_spec(shape):
        return pl.BlockSpec(shape, lambda i: (i, 0))

    def weight_spec(arr):
        # Weights/biases are grid-invariant (constant index_map) and stay
        # resident in VMEM across the whole batch loop.
        return pl.BlockSpec(arr.shape, lambda i: (0, 0))

    weight_args = [fp["w0_feat"], fp["w0_emb"], fp["b0"]]
    for w, bb in fp["mediate"]:
        weight_args += [w, bb]
    weight_args += [fp["w_last"], fp["b_last"]]

    in_specs = ([batch_spec((tb, 4)), batch_spec((tb, fc))]
                + [weight_spec(a) for a in weight_args])

    out = pl.pallas_call(
        kernel,
        out_shape=jax.ShapeDtypeStruct((b, dout_p), jnp.float32),
        grid_spec=pltpu.PrefetchScalarGridSpec(
            num_scalar_prefetch=0,
            grid=grid,
            in_specs=in_specs,
            out_specs=batch_spec((tb, dout_p)),
        ),
        compiler_params=pltpu.CompilerParams(
            dimension_semantics=("parallel",),
            vmem_limit_bytes=32 * 1024 * 1024),
    )(idx, feature, *weight_args)
    return out[:, :dout]


# ----------------------------------------------------------------------------
if __name__ == "__main__":
    key = jax.random.PRNGKey(0)
    k_params, k_feat, k_t1, k_s1, k_t2, k_s2 = jax.random.split(key, 6)

    batch = 8
    feature_channel = 32
    output_channel = 8
    hidden_list = [64, 32]

    params = init_params(k_params, feature_channel, output_channel, hidden_list)

    feature = jax.random.normal(k_feat, (batch, feature_channel), jnp.float32)
    additional1 = {
        "tissue_index": jax.random.randint(k_t1, (batch,), 0, 32, jnp.int32),
        "sex_index": jax.random.randint(k_s1, (batch,), 0, 4, jnp.int32),
    }
    additional2 = {
        "tissue_index": jax.random.randint(k_t2, (batch,), 0, 32, jnp.int32),
        "sex_index": jax.random.randint(k_s2, (batch,), 0, 4, jnp.int32),
    }

    # pure-JAX reference of the original module
    def ref_forward(params, feature, a1, a2):
        t1 = params["tissue_emb"][a1["tissue_index"]] * 7.0
        s1 = params["sex_emb"][a1["sex_index"]] * 7.0
        t2 = params["tissue_emb"][a2["tissue_index"]] * 7.0
        s2 = params["sex_emb"][a2["sex_index"]] * 7.0
        x = jnp.concatenate([feature, t1, s1, t2, s2], axis=1)
        for w, b in params["blocks"]:
            x = jnp.maximum(x @ w + b, 0.0)
        w, b = params["last"]
        return x @ w + b

    ref = ref_forward(params, feature, additional1, additional2)

    # f32 MXU operands: matches the PyTorch reference tightly.
    fused_f32 = prepare_fused_params(params, feature_channel,
                                     compute_dtype=jnp.float32)
    out = fcnet_2embedding_forward(fused_f32, feature, additional1, additional2)
    out = jax.block_until_ready(out)
    assert out.shape == (batch, output_channel), out.shape
    assert jnp.allclose(out, ref, atol=1e-3, rtol=1e-3), \
        float(jnp.max(jnp.abs(out - ref)))

    # bf16 MXU operands (recommended on v5e/v6e/v7x): f32 accumulation and
    # f32 elementwise, looser tolerance vs the f32 reference.
    fused_bf16 = prepare_fused_params(params, feature_channel,
                                      compute_dtype=jnp.bfloat16)
    out_bf16 = fcnet_2embedding_forward(fused_bf16, feature, additional1,
                                        additional2)
    out_bf16 = jax.block_until_ready(out_bf16)
    assert out_bf16.shape == (batch, output_channel), out_bf16.shape
    assert jnp.allclose(out_bf16, ref, atol=1e-1, rtol=1e-1), \
        float(jnp.max(jnp.abs(out_bf16 - ref)))

    print("KERNEL_OK")
</pallas_src>

<mosaic_0001>
module attributes {stable_mosaic.version = 11 : i64} {
  func.func @_fused_mlp_kernel(%arg0: i32, %arg1: memref<8x4xi32, #tpu.memory_space<vmem>>, %arg2: memref<8x32xf32, #tpu.memory_space<vmem>>, %arg3: memref<32x128xf32, #tpu.memory_space<vmem>>, %arg4: memref<128x128xf32, #tpu.memory_space<vmem>>, %arg5: memref<1x128xf32, #tpu.memory_space<vmem>>, %arg6: memref<128x128xf32, #tpu.memory_space<vmem>>, %arg7: memref<1x128xf32, #tpu.memory_space<vmem>>, %arg8: memref<128x128xf32, #tpu.memory_space<vmem>>, %arg9: memref<1x128xf32, #tpu.memory_space<vmem>>, %arg10: memref<8x128xf32, #tpu.memory_space<vmem>>) attributes {dimension_semantics = [#tpu.dimension_semantics<parallel>], iteration_bounds = array<i64: 1>, scalar_prefetch = 0 : i64, scratch_operands = 0 : i64, tpu.core_type = #tpu.core_type<tc>, window_params = [{transform_indices = @transform_0, window_bounds = array<i64: 8, 4>}, {transform_indices = @transform_1, window_bounds = array<i64: 8, 32>}, {pipeline_mode = #tpu.pipeline_mode<synchronous>, transform_indices = @transform_2, window_bounds = array<i64: 32, 128>}, {pipeline_mode = #tpu.pipeline_mode<synchronous>, transform_indices = @transform_3, window_bounds = array<i64: 128, 128>}, {pipeline_mode = #tpu.pipeline_mode<synchronous>, transform_indices = @transform_4, window_bounds = array<i64: 1, 128>}, {pipeline_mode = #tpu.pipeline_mode<synchronous>, transform_indices = @transform_5, window_bounds = array<i64: 128, 128>}, {pipeline_mode = #tpu.pipeline_mode<synchronous>, transform_indices = @transform_6, window_bounds = array<i64: 1, 128>}, {pipeline_mode = #tpu.pipeline_mode<synchronous>, transform_indices = @transform_7, window_bounds = array<i64: 128, 128>}, {pipeline_mode = #tpu.pipeline_mode<synchronous>, transform_indices = @transform_8, window_bounds = array<i64: 1, 128>}, {transform_indices = @transform_9, window_bounds = array<i64: 8, 128>}]} {
    %c0 = arith.constant 0 : index
    %c0_0 = arith.constant 0 : index
    %0 = vector.load %arg1[%c0, %c0_0] : memref<8x4xi32, #tpu.memory_space<vmem>>, vector<8x4xi32>
    %1 = tpu.iota {dimensions = array<i32: 1>} : vector<8x128xi32>
    %2 = vector.extract_strided_slice %0 {offsets = [0, 0], sizes = [8, 1], strides = [1, 1]} : vector<8x4xi32> to vector<8x1xi32>
    %3 = vector.broadcast %2 : vector<8x1xi32> to vector<8x128xi32>
    %4 = arith.cmpi eq, %3, %1 : vector<8x128xi32>
    %5 = vector.extract_strided_slice %0 {offsets = [0, 1], sizes = [8, 1], strides = [1, 1]} : vector<8x4xi32> to vector<8x1xi32>
    %6 = vector.broadcast %5 : vector<8x1xi32> to vector<8x128xi32>
    %7 = arith.cmpi eq, %6, %1 : vector<8x128xi32>
    %8 = arith.ori %4, %7 : vector<8x128xi1>
    %9 = vector.extract_strided_slice %0 {offsets = [0, 2], sizes = [8, 1], strides = [1, 1]} : vector<8x4xi32> to vector<8x1xi32>
    %10 = vector.broadcast %9 : vector<8x1xi32> to vector<8x128xi32>
    %11 = arith.cmpi eq, %10, %1 : vector<8x128xi32>
    %12 = arith.ori %8, %11 : vector<8x128xi1>
    %13 = vector.extract_strided_slice %0 {offsets = [0, 3], sizes = [8, 1], strides = [1, 1]} : vector<8x4xi32> to vector<8x1xi32>
    %14 = vector.broadcast %13 : vector<8x1xi32> to vector<8x128xi32>
    %15 = arith.cmpi eq, %14, %1 : vector<8x128xi32>
    %16 = arith.ori %12, %15 : vector<8x128xi1>
    %17 = arith.extui %16 : vector<8x128xi1> to vector<8x128xi32>
    %18 = arith.sitofp %17 : vector<8x128xi32> to vector<8x128xf32>
    %c0_1 = arith.constant 0 : index
    %c0_2 = arith.constant 0 : index
    %19 = vector.load %arg2[%c0_1, %c0_2] : memref<8x32xf32, #tpu.memory_space<vmem>>, vector<8x32xf32>
    %c0_3 = arith.constant 0 : index
    %c0_4 = arith.constant 0 : index
    %20 = vector.load %arg3[%c0_3, %c0_4] : memref<32x128xf32, #tpu.memory_space<vmem>>, vector<32x128xf32>
    %cst = arith.constant dense<0.000000e+00> : vector<8x128xf32>
    %21 = tpu.matmul %19, %20, %cst {dimension_numbers = #tpu.dot_dimension_numbers<[1], [0], [0], [1], [0, 0, 1, 1], [], []>} : vector<8x32xf32>, vector<32x128xf32>, vector<8x128xf32> -> vector<8x128xf32>
    %c0_5 = arith.constant 0 : index
    %c0_6 = arith.constant 0 : index
    %22 = vector.load %arg4[%c0_5, %c0_6] : memref<128x128xf32, #tpu.memory_space<vmem>>, vector<128x128xf32>
    %cst_7 = arith.constant dense<0.000000e+00> : vector<8x128xf32>
    %23 = tpu.matmul %18, %22, %cst_7 {dimension_numbers = #tpu.dot_dimension_numbers<[1], [0], [0], [1], [0, 0, 1, 1], [], []>} : vector<8x128xf32>, vector<128x128xf32>, vector<8x128xf32> -> vector<8x128xf32>
    %24 = arith.addf %21, %23 : vector<8x128xf32>
    %c0_8 = arith.constant 0 : index
    %c0_9 = arith.constant 0 : index
    %25 = vector.load %arg5[%c0_8, %c0_9] : memref<1x128xf32, #tpu.memory_space<vmem>>, vector<1x128xf32>
    %26 = vector.broadcast %25 : vector<1x128xf32> to vector<8x128xf32>
    %27 = arith.addf %24, %26 : vector<8x128xf32>
    %cst_10 = arith.constant 0.000000e+00 : f32
    %28 = vector.broadcast %cst_10 : f32 to vector<8x128xf32>
    %29 = arith.maximumf %27, %28 : vector<8x128xf32>
    %c0_11 = arith.constant 0 : index
    %c0_12 = arith.constant 0 : index
    %30 = vector.load %arg6[%c0_11, %c0_12] : memref<128x128xf32, #tpu.memory_space<vmem>>, vector<128x128xf32>
    %cst_13 = arith.constant dense<0.000000e+00> : vector<8x128xf32>
    %31 = tpu.matmul %29, %30, %cst_13 {dimension_numbers = #tpu.dot_dimension_numbers<[1], [0], [0], [1], [0, 0, 1, 1], [], []>} : vector<8x128xf32>, vector<128x128xf32>, vector<8x128xf32> -> vector<8x128xf32>
    %c0_14 = arith.constant 0 : index
    %c0_15 = arith.constant 0 : index
    %32 = vector.load %arg7[%c0_14, %c0_15] : memref<1x128xf32, #tpu.memory_space<vmem>>, vector<1x128xf32>
    %33 = vector.broadcast %32 : vector<1x128xf32> to vector<8x128xf32>
    %34 = arith.addf %31, %33 : vector<8x128xf32>
    %cst_16 = arith.constant 0.000000e+00 : f32
    %35 = vector.broadcast %cst_16 : f32 to vector<8x128xf32>
    %36 = arith.maximumf %34, %35 : vector<8x128xf32>
    %c0_17 = arith.constant 0 : index
    %c0_18 = arith.constant 0 : index
    %37 = vector.load %arg8[%c0_17, %c0_18] : memref<128x128xf32, #tpu.memory_space<vmem>>, vector<128x128xf32>
    %cst_19 = arith.constant dense<0.000000e+00> : vector<8x128xf32>
    %38 = tpu.matmul %36, %37, %cst_19 {dimension_numbers = #tpu.dot_dimension_numbers<[1], [0], [0], [1], [0, 0, 1, 1], [], []>} : vector<8x128xf32>, vector<128x128xf32>, vector<8x128xf32> -> vector<8x128xf32>
    %c0_20 = arith.constant 0 : index
    %c0_21 = arith.constant 0 : index
    %39 = vector.load %arg9[%c0_20, %c0_21] : memref<1x128xf32, #tpu.memory_space<vmem>>, vector<1x128xf32>
    %40 = vector.broadcast %39 : vector<1x128xf32> to vector<8x128xf32>
    %41 = arith.addf %38, %40 : vector<8x128xf32>
    %c0_22 = arith.constant 0 : index
    %c0_23 = arith.constant 0 : index
    %42 = vector.load %arg10[%c0_22, %c0_23] : memref<8x128xf32, #tpu.memory_space<vmem>>, vector<8x128xf32>
    tpu.vector_store %arg10[%c0_22, %c0_23], %41 {strides = array<i32>} : memref<8x128xf32, #tpu.memory_space<vmem>>, vector<8x128xf32>,
    return
  }
  func.func @transform_0(%arg0: i32) -> (i32, i32) {
    %c0_i32 = arith.constant 0 : i32
    %c0_i32_0 = arith.constant 0 : i32
    return %arg0, %c0_i32 : i32, i32
  }
  func.func @transform_1(%arg0: i32) -> (i32, i32) {
    %c0_i32 = arith.constant 0 : i32
    %c0_i32_0 = arith.constant 0 : i32
    return %arg0, %c0_i32 : i32, i32
  }
  func.func @transform_2(%arg0: i32) -> (i32, i32) {
    %c0_i32 = arith.constant 0 : i32
    %c0_i32_0 = arith.constant 0 : i32
    %c0_i32_1 = arith.constant 0 : i32
    return %c0_i32, %c0_i32_0 : i32, i32
  }
  func.func @transform_3(%arg0: i32) -> (i32, i32) {
    %c0_i32 = arith.constant 0 : i32
    %c0_i32_0 = arith.constant 0 : i32
    %c0_i32_1 = arith.constant 0 : i32
    return %c0_i32, %c0_i32_0 : i32, i32
  }
  func.func @transform_4(%arg0: i32) -> (i32, i32) {
    %c0_i32 = arith.constant 0 : i32
    %c0_i32_0 = arith.constant 0 : i32
    %c0_i32_1 = arith.constant 0 : i32
    return %c0_i32, %c0_i32_0 : i32, i32
  }
  func.func @transform_5(%arg0: i32) -> (i32, i32) {
    %c0_i32 = arith.constant 0 : i32
    %c0_i32_0 = arith.constant 0 : i32
    %c0_i32_1 = arith.constant 0 : i32
    return %c0_i32, %c0_i32_0 : i32, i32
  }
  func.func @transform_6(%arg0: i32) -> (i32, i32) {
    %c0_i32 = arith.constant 0 : i32
    %c0_i32_0 = arith.constant 0 : i32
    %c0_i32_1 = arith.constant 0 : i32
    return %c0_i32, %c0_i32_0 : i32, i32
  }
  func.func @transform_7(%arg0: i32) -> (i32, i32) {
    %c0_i32 = arith.constant 0 : i32
    %c0_i32_0 = arith.constant 0 : i32
    %c0_i32_1 = arith.constant 0 : i32
    return %c0_i32, %c0_i32_0 : i32, i32
  }
  func.func @transform_8(%arg0: i32) -> (i32, i32) {
    %c0_i32 = arith.constant 0 : i32
    %c0_i32_0 = arith.constant 0 : i32
    %c0_i32_1 = arith.constant 0 : i32
    return %c0_i32, %c0_i32_0 : i32, i32
  }
  func.func @transform_9(%arg0: i32) -> (i32, i32) {
    %c0_i32 = arith.constant 0 : i32
    %c0_i32_0 = arith.constant 0 : i32
    return %arg0, %c0_i32 : i32, i32
  }
}

</mosaic_0001>

<llo_original>
// kernel: tpu_custom_call.1
$region0: #{tpu_custom_call.1}
  #allocation0 [shape = 'u32[]', space=smem, size = 0x4, offset = 0x4, fixed_abs, tag = 'smem constant byte address 0x4 - core index']
  #allocation1 [shape = 'u32[72,128]{1,0:T(1,128)}', space=vmem, size = 0x9000, scoped, tag = 'internal scratch']
  %s0 = inlined_call_operand.vmem [shape: s32[8,4], index: 0, kind: input, shape index: {}]
  %s1 = inlined_call_operand.vmem [shape: f32[8,32], index: 1, kind: input, shape index: {}]
  %s2 = inlined_call_operand.hbm [shape: f32[32,128], index: 2, kind: input, shape index: {}]
  %s3 = inlined_call_operand.hbm [shape: f32[128,128], index: 3, kind: input, shape index: {}]
  %s4 = inlined_call_operand.vmem [shape: f32[1,128], index: 4, kind: input, shape index: {}]
  %s5 = inlined_call_operand.hbm [shape: f32[128,128], index: 5, kind: input, shape index: {}]
  %s6 = inlined_call_operand.vmem [shape: f32[1,128], index: 6, kind: input, shape index: {}]
  %s7 = inlined_call_operand.hbm [shape: f32[128,128], index: 7, kind: input, shape index: {}]
  %s8 = inlined_call_operand.vmem [shape: f32[1,128], index: 8, kind: input, shape index: {}]
  %s9 = inlined_call_operand.hbm [shape: f32[8,128], index: 9, kind: output, shape index: {}]
  %s10 = sld [smem:[#allocation0]]
  $region62: #{tpu_custom_call.1} parent=0
    _
  %s12 = ssub.s32 1, %s10
  %s13 = scalar_select 0, %s12, %s10
  $region1: #{tpu_custom_call.1} parent=0
    #allocation2 [shape = 'u8[16384]{0}', space=vmem, size = 0x4000, scoped, tag = 'input window, operand 2, single buffered']
    #allocation3 [shape = 's32[1]{0}', space=sflag, size = 0x4, scoped, tag = 'scoped memory for tpu_custom_call.1']
    #allocation4 [shape = 's32[1]{0}', space=sflag, size = 0x4, scoped, tag = 'scoped memory for tpu_custom_call.1']
    #allocation5 [shape = 'u8[65536]{0}', space=vmem, size = 0x10000, scoped, tag = 'input window, operand 3, single buffered']
    #allocation6 [shape = 's32[1]{0}', space=sflag, size = 0x4, scoped, tag = 'scoped memory for tpu_custom_call.1']
    #allocation7 [shape = 'u8[65536]{0}', space=vmem, size = 0x10000, scoped, tag = 'input window, operand 5, single buffered']
    #allocation8 [shape = 'u8[65536]{0}', space=vmem, size = 0x10000, scoped, tag = 'input window, operand 7, single buffered']
    #allocation9 [shape = 's32[1]{0}', space=sflag, size = 0x4, scoped, tag = 'scoped memory for tpu_custom_call.1']
    #allocation10 [shape = 'u8[4096]{0}', space=vmem, size = 0x1000, scoped, tag = 'output window, operand 0, single buffered']
    %14 = vsyncpa [#allocation3], 0
    %15 = vsyncpa [#allocation6], 0
    %16 = vsyncpa [#allocation9], 0
    %17 = vsyncpa [#allocation4], 0
    // Predicated region
    $region2: #{tpu_custom_call.1} parent=1 // pred_check
      _
    $region3: #{tpu_custom_call.1} parent=1 // pred_check_branch
      %19 = sbr.rel (0) target = $region5
    $region4: #{tpu_custom_call.1} parent=1 // pred_region
      _
    $region5: #{tpu_custom_call.1} parent=1 // pred_fallthru
      _
    // Predicated region
    $region6: #{tpu_custom_call.1} parent=1 // pred_check
      _
    $region7: #{tpu_custom_call.1} parent=1 // pred_check_branch
      %21 = sbr.rel (0) target = $region9
    $region8: #{tpu_custom_call.1} parent=1 // pred_region
      _
    $region9: #{tpu_custom_call.1} parent=1 // pred_fallthru
      _
    // Predicated region
    $region10: #{tpu_custom_call.1} parent=1 // pred_check
      _
    $region11: #{tpu_custom_call.1} parent=1 // pred_check_branch
      %23 = sbr.rel (0) target = $region13
    $region12: #{tpu_custom_call.1} parent=1 // pred_region
      %25 = vsyncadd [#allocation3], 0
      %s26 = sshll.u32 %s2, 4
      %s27 = int_to_ptr.hbm [resolvable:$true] %s26
      %s28 = sshll.u32 [#allocation2], 4
      %s29 = int_to_ptr.vmem [resolvable:$true] %s28
      %34 = dma.hbm_to_vmem [thread:$0]  %s27, 512, %s29, [#allocation3], 128, 128, 8
    $region13: #{tpu_custom_call.1} parent=1 // pred_fallthru
      _
    // Predicated region
    $region14: #{tpu_custom_call.1} parent=1 // pred_check
      _
    $region15: #{tpu_custom_call.1} parent=1 // pred_check_branch
      %36 = sbr.rel (0) target = $region17
    $region16: #{tpu_custom_call.1} parent=1 // pred_region
      %38 = vsyncadd [#allocation6], 0
      %s39 = sshll.u32 %s3, 4
      %s40 = int_to_ptr.hbm [resolvable:$true] %s39
      %s41 = sshll.u32 [#allocation5], 4
      %s42 = int_to_ptr.vmem [resolvable:$true] %s41
      %47 = dma.hbm_to_vmem [thread:$0]  %s40, 2048, %s42, [#allocation6], 128, 128, 8
    $region17: #{tpu_custom_call.1} parent=1 // pred_fallthru
      _
    // Predicated region
    $region18: #{tpu_custom_call.1} parent=1 // pred_check
      _
    $region19: #{tpu_custom_call.1} parent=1 // pred_check_branch
      %49 = sbr.rel (0) target = $region21
    $region20: #{tpu_custom_call.1} parent=1 // pred_region
      _
    $region21: #{tpu_custom_call.1} parent=1 // pred_fallthru
      _
    // Predicated region
    $region22: #{tpu_custom_call.1} parent=1 // pred_check
      _
    $region23: #{tpu_custom_call.1} parent=1 // pred_check_branch
      %51 = sbr.rel (0) target = $region25
    $region24: #{tpu_custom_call.1} parent=1 // pred_region
      %53 = vsyncadd [#allocation6], 0
      %s54 = sshll.u32 %s5, 4
      %s55 = int_to_ptr.hbm [resolvable:$true] %s54
      %s56 = sshll.u32 [#allocation7], 4
      %s57 = int_to_ptr.vmem [resolvable:$true] %s56
      %62 = dma.hbm_to_vmem [thread:$0]  %s55, 2048, %s57, [#allocation6], 128, 128, 8
    $region25: #{tpu_custom_call.1} parent=1 // pred_fallthru
      _
    // Predicated region
    $region26: #{tpu_custom_call.1} parent=1 // pred_check
      _
    $region27: #{tpu_custom_call.1} parent=1 // pred_check_branch
      %64 = sbr.rel (0) target = $region29
    $region28: #{tpu_custom_call.1} parent=1 // pred_region
      _
    $region29: #{tpu_custom_call.1} parent=1 // pred_fallthru
      _
    // Predicated region
    $region30: #{tpu_custom_call.1} parent=1 // pred_check
      _
    $region31: #{tpu_custom_call.1} parent=1 // pred_check_branch
      %66 = sbr.rel (0) target = $region33
    $region32: #{tpu_custom_call.1} parent=1 // pred_region
      %68 = vsyncadd [#allocation9], 0
      %s69 = sshll.u32 %s7, 4
      %s70 = int_to_ptr.hbm [resolvable:$true] %s69
      %s71 = sshll.u32 [#allocation8], 4
      %s72 = int_to_ptr.vmem [resolvable:$true] %s71
      %77 = dma.hbm_to_vmem [thread:$0]  %s70, 2048, %s72, [#allocation9], 128, 128, 8
    $region33: #{tpu_custom_call.1} parent=1 // pred_fallthru
      _
    // Predicated region
    $region34: #{tpu_custom_call.1} parent=1 // pred_check
      _
    $region35: #{tpu_custom_call.1} parent=1 // pred_check_branch
      %79 = sbr.rel (0) target = $region37
    $region36: #{tpu_custom_call.1} parent=1 // pred_region
      _
    $region37: #{tpu_custom_call.1} parent=1 // pred_fallthru
      _
    // Predicated region
    $region38: #{tpu_custom_call.1} parent=1 // pred_check
      _
    $region39: #{tpu_custom_call.1} parent=1 // pred_check_branch
      %81 = sbr.rel (0) target = $region41
    $region40: #{tpu_custom_call.1} parent=1 // pred_region
      %83 = dma.done [#allocation3], 512
    $region41: #{tpu_custom_call.1} parent=1 // pred_fallthru
      _
    // Predicated region
    $region42: #{tpu_custom_call.1} parent=1 // pred_check
      _
    $region43: #{tpu_custom_call.1} parent=1 // pred_check_branch
      %85 = sbr.rel (0) target = $region45
    $region44: #{tpu_custom_call.1} parent=1 // pred_region
      %87 = dma.done [#allocation6], 2048
    $region45: #{tpu_custom_call.1} parent=1 // pred_fallthru
      _
    // Predicated region
    $region46: #{tpu_custom_call.1} parent=1 // pred_check
      _
    $region47: #{tpu_custom_call.1} parent=1 // pred_check_branch
      %89 = sbr.rel (0) target = $region49
    $region48: #{tpu_custom_call.1} parent=1 // pred_region
      %91 = dma.done [#allocation6], 2048
    $region49: #{tpu_custom_call.1} parent=1 // pred_fallthru
      _
    // Predicated region
    $region50: #{tpu_custom_call.1} parent=1 // pred_check
      _
    $region51: #{tpu_custom_call.1} parent=1 // pred_check_branch
      %93 = sbr.rel (0) target = $region53
    $region52: #{tpu_custom_call.1} parent=1 // pred_region
      %95 = dma.done [#allocation9], 2048
    $region53: #{tpu_custom_call.1} parent=1 // pred_fallthru
      _
    %v96 = vld [vmem:[%s0] sm:$0xff]
    %v97 = vlaneseq
    %v98 = vand.u32 %v97, 127
    %99 = vset.pattern.permute.xlu0 0
    %100 = vperm.xlu0 %99, %v96
    %v101 = vpop.permute.xlu0 %100
    %vm102 = vcmp.eq.s32.totalorder %v101, %v98
    %103 = vset.pattern.permute.xlu0 1
    %104 = vperm.xlu0 %103, %v96
    %v105 = vpop.permute.xlu0 %104
    %vm106 = vcmp.eq.s32.totalorder %v105, %v98
    %vm107 = vmor %vm102, %vm106
    %108 = vset.pattern.permute.xlu0 2
    %109 = vperm.xlu0 %108, %v96
    %v110 = vpop.permute.xlu0 %109
    %vm111 = vcmp.eq.s32.totalorder %v110, %v98
    %vm112 = vmor %vm107, %vm111
    %113 = vset.pattern.permute.xlu0 3
    %114 = vperm.xlu0 %113, %v96
    %v115 = vpop.permute.xlu0 %114
    %vm116 = vcmp.eq.s32.totalorder %v115, %v98
    %vm117 = vmor %vm112, %vm116
    %v118 = vsel %vm117, 1, 0
    %v119 = vcvt.s32.f32 %v118
    %v120 = vld [vmem:[%s1] sm:$0xff]
    %v121 = vld [vmem:[#allocation2] sm:$0xff]
    %v122 = vld [vmem:[#allocation2 + $0x8] sm:$0xff]
    %v123 = vld [vmem:[#allocation2 + $0x10] sm:$0xff]
    %v124 = vld [vmem:[#allocation2 + $0x18] sm:$0xff]
    %v125 = vld [vmem:[#allocation5] sm:$0xff]
    %v126 = vld [vmem:[#allocation5 + $0x8] sm:$0xff]
    %v127 = vld [vmem:[#allocation5 + $0x10] sm:$0xff]
    %v128 = vld [vmem:[#allocation5 + $0x18] sm:$0xff]
    %v129 = vld [vmem:[#allocation5 + $0x20] sm:$0xff]
    %v130 = vld [vmem:[#allocation5 + $0x28] sm:$0xff]
    %v131 = vld [vmem:[#allocation5 + $0x30] sm:$0xff]
    %v132 = vld [vmem:[#allocation5 + $0x38] sm:$0xff]
    %v133 = vld [vmem:[#allocation5 + $0x40] sm:$0xff]
    %v134 = vld [vmem:[#allocation5 + $0x48] sm:$0xff]
    %v135 = vld [vmem:[#allocation5 + $0x50] sm:$0xff]
    %v136 = vld [vmem:[#allocation5 + $0x58] sm:$0xff]
    %v137 = vld [vmem:[#allocation5 + $0x60] sm:$0xff]
    %v138 = vld [vmem:[#allocation5 + $0x68] sm:$0xff]
    %v139 = vld [vmem:[#allocation5 + $0x70] sm:$0xff]
    %v140 = vld [vmem:[#allocation5 + $0x78] sm:$0xff]
    %141 = vmatpush.msra.mxu0 %v140
    %142 = vmatpush.msra.mxu0 %v139
    %143 = vmatpush.msra.mxu0 %v138
    %144 = vmatpush.msra.mxu0 %v137
    %145 = vmatpush.msra.mxu0 %v136
    %146 = vmatpush.msra.mxu0 %v135
    %147 = vmatpush.msra.mxu0 %v134
    %148 = vmatpush.msra.mxu0 %v133
    %149 = vmatpush.msra.mxu0 %v132
    %150 = vmatpush.msra.mxu0 %v131
    %151 = vmatpush.msra.mxu0 %v130
    %152 = vmatpush.msra.mxu0 %v129
    %153 = vmatpush.msra.mxu0 %v128
    %154 = vmatpush.msra.mxu0 %v127
    %155 = vmatpush.msra.mxu0 %v126
    %156 = vmatpush.msra.mxu0 %v125
    %157 = vmatmul.f32.gmra.mxu0 %v119
    %v158 = vpop.f32.mrf.mxu0
    %v159 = vadd.f32 0.0, %v158
    %160 = vdwg.mxu0
    %vm161 = vcmask 261120
    %v163 = vsel %vm161, %v120, 0
    %165 = vmatpush.msra.mxu0 0.0
    %166 = vmatpush.msra.mxu0 0.0
    %167 = vmatpush.msra.mxu0 0.0
    %168 = vmatpush.msra.mxu0 0.0
    %169 = vmatpush.msra.mxu0 0.0
    %170 = vmatpush.msra.mxu0 0.0
    %171 = vmatpush.msra.mxu0 0.0
    %172 = vmatpush.msra.mxu0 0.0
    %173 = vmatpush.msra.mxu0 0.0
    %174 = vmatpush.msra.mxu0 0.0
    %175 = vmatpush.msra.mxu0 0.0
    %176 = vmatpush.msra.mxu0 0.0
    %177 = vmatpush.msra.mxu0 %v124
    %178 = vmatpush.msra.mxu0 %v123
    %179 = vmatpush.msra.mxu0 %v122
    %180 = vmatpush.msra.mxu0 %v121
    %181 = vmatmul.f32.gmra.mxu0 %v163
    %v182 = vpop.f32.mrf.mxu0
    %v183 = vadd.f32 %v159, %v182
    %184 = vdwg.mxu0
    %v185 = vld [vmem:[%s4] sm:$0x1]
    %v187 = vperm.slane %v185, 0
    %v189 = vadd.f32 %v183, %v187
    %v190 = vmax.f32 %v189, 0.0
    %v191 = vld [vmem:[#allocation7] sm:$0xff]
    %v192 = vld [vmem:[#allocation7 + $0x8] sm:$0xff]
    %v193 = vld [vmem:[#allocation7 + $0x10] sm:$0xff]
    %v194 = vld [vmem:[#allocation7 + $0x18] sm:$0xff]
    %v195 = vld [vmem:[#allocation7 + $0x20] sm:$0xff]
    %v196 = vld [vmem:[#allocation7 + $0x28] sm:$0xff]
    %v197 = vld [vmem:[#allocation7 + $0x30] sm:$0xff]
    %v198 = vld [vmem:[#allocation7 + $0x38] sm:$0xff]
    %v199 = vld [vmem:[#allocation7 + $0x40] sm:$0xff]
    %v200 = vld [vmem:[#allocation7 + $0x48] sm:$0xff]
    %v201 = vld [vmem:[#allocation7 + $0x50] sm:$0xff]
    %v202 = vld [vmem:[#allocation7 + $0x58] sm:$0xff]
    %v203 = vld [vmem:[#allocation7 + $0x60] sm:$0xff]
    %v204 = vld [vmem:[#allocation7 + $0x68] sm:$0xff]
    %v205 = vld [vmem:[#allocation7 + $0x70] sm:$0xff]
    %v206 = vld [vmem:[#allocation7 + $0x78] sm:$0xff]
    %v207 = vld [vmem:[%s6] sm:$0x1]
    %v209 = vperm.slane %v207, 0
    %211 = vmatpush.msra.mxu0 %v206
    %212 = vmatpush.msra.mxu0 %v205
    %213 = vmatpush.msra.mxu0 %v204
    %214 = vmatpush.msra.mxu0 %v203
    %215 = vmatpush.msra.mxu0 %v202
    %216 = vmatpush.msra.mxu0 %v201
    %217 = vmatpush.msra.mxu0 %v200
    %218 = vmatpush.msra.mxu0 %v199
    %219 = vmatpush.msra.mxu0 %v198
    %220 = vmatpush.msra.mxu0 %v197
    %221 = vmatpush.msra.mxu0 %v196
    %222 = vmatpush.msra.mxu0 %v195
    %223 = vmatpush.msra.mxu0 %v194
    %224 = vmatpush.msra.mxu0 %v193
    %225 = vmatpush.msra.mxu0 %v192
    %226 = vmatpush.msra.mxu0 %v191
    %227 = vmatmul.f32.gmra.mxu0 %v190
    %v228 = vpop.f32.mrf.mxu0
    %v229 = vadd.f32 %v209, %v228
    %230 = vdwg.mxu0
    %v231 = vmax.f32 %v229, 0.0
    %v232 = vld [vmem:[#allocation8] sm:$0xff]
    %v233 = vld [vmem:[#allocation8 + $0x8] sm:$0xff]
    %v234 = vld [vmem:[#allocation8 + $0x10] sm:$0xff]
    %v235 = vld [vmem:[#allocation8 + $0x18] sm:$0xff]
    %v236 = vld [vmem:[#allocation8 + $0x20] sm:$0xff]
    %v237 = vld [vmem:[#allocation8 + $0x28] sm:$0xff]
    %v238 = vld [vmem:[#allocation8 + $0x30] sm:$0xff]
    %v239 = vld [vmem:[#allocation8 + $0x38] sm:$0xff]
    %v240 = vld [vmem:[#allocation8 + $0x40] sm:$0xff]
    %v241 = vld [vmem:[#allocation8 + $0x48] sm:$0xff]
    %v242 = vld [vmem:[#allocation8 + $0x50] sm:$0xff]
    %v243 = vld [vmem:[#allocation8 + $0x58] sm:$0xff]
    %v244 = vld [vmem:[#allocation8 + $0x60] sm:$0xff]
    %v245 = vld [vmem:[#allocation8 + $0x68] sm:$0xff]
    %v246 = vld [vmem:[#allocation8 + $0x70] sm:$0xff]
    %v247 = vld [vmem:[#allocation8 + $0x78] sm:$0xff]
    %v248 = vld [vmem:[%s8] sm:$0x1]
    %v250 = vperm.slane %v248, 0
    %252 = vmatpush.msra.mxu0 %v247
    %253 = vmatpush.msra.mxu0 %v246
    %254 = vmatpush.msra.mxu0 %v245
    %255 = vmatpush.msra.mxu0 %v244
    %256 = vmatpush.msra.mxu0 %v243
    %257 = vmatpush.msra.mxu0 %v242
    %258 = vmatpush.msra.mxu0 %v241
    %259 = vmatpush.msra.mxu0 %v240
    %260 = vmatpush.msra.mxu0 %v239
    %261 = vmatpush.msra.mxu0 %v238
    %262 = vmatpush.msra.mxu0 %v237
    %263 = vmatpush.msra.mxu0 %v236
    %264 = vmatpush.msra.mxu0 %v235
    %265 = vmatpush.msra.mxu0 %v234
    %266 = vmatpush.msra.mxu0 %v233
    %267 = vmatpush.msra.mxu0 %v232
    %268 = vmatmul.f32.gmra.mxu0 %v231
    %v269 = vpop.f32.mrf.mxu0
    %v270 = vadd.f32 %v250, %v269
    %271 = vdwg.mxu0
    %272 = vst [vmem:[#allocation10] sm:$0xff] %v270
    // Predicated region
    $region54: #{tpu_custom_call.1} parent=1 // pred_check
      _
    $region55: #{tpu_custom_call.1} parent=1 // pred_check_branch
      %274 = sbr.rel (0) target = $region57
    $region56: #{tpu_custom_call.1} parent=1 // pred_region
      %276 = vsyncadd [#allocation4], 0
      %s278 = sshll.u32 [#allocation10], 4
      %s279 = int_to_ptr.vmem [resolvable:$true] %s278
      %s280 = sshll.u32 %s9, 4
      %s281 = int_to_ptr.hbm [resolvable:$true] %s280
      %283 = dma.vmem_to_hbm [thread:$0]  %s279, 128, %s281, [#allocation4]
    $region57: #{tpu_custom_call.1} parent=1 // pred_fallthru
      _
    // Predicated region
    $region58: #{tpu_custom_call.1} parent=1 // pred_check
      _
    $region59: #{tpu_custom_call.1} parent=1 // pred_check_branch
      %285 = sbr.rel (0) target = $region61
    $region60: #{tpu_custom_call.1} parent=1 // pred_region
      %287 = dma.done [#allocation4], 128
    $region61: #{tpu_custom_call.1} parent=1 // pred_fallthru
      _
    %288 = vsyncpa [#allocation3], 1
    %289 = vsyncpa [#allocation6], 1
    %290 = vsyncpa [#allocation9], 1
    %291 = vsyncpa [#allocation4], 1

</llo_original>
